<compile_context>
chip_gen: v5e
topology: v5e:2x2
jax: 0.10.0
libtpu: 0.0.40
codegen_flags: <defaults>
</compile_context>

<pallas_src>
import jax
import jax.numpy as jnp
from jax.experimental import pallas as pl
from jax.experimental.pallas import tpu as pltpu


def _inv_sigmoid_loss_kernel(src_ref, tgt_ref, out_ref):
    src = src_ref[...].astype(jnp.float32)
    tgt = tgt_ref[...].astype(jnp.float32)
    # 1/sigmoid(x) - 1 == exp(-x)
    out_ref[...] = jnp.abs(jnp.exp(-src) - tgt).astype(out_ref.dtype)


def _inv_sigmoid_loss_weighted_kernel(src_ref, tgt_ref, w_ref, out_ref):
    src = src_ref[...].astype(jnp.float32)
    tgt = tgt_ref[...].astype(jnp.float32)
    w = w_ref[...].astype(jnp.float32)
    out_ref[...] = (jnp.abs(jnp.exp(-src) - tgt) * w).astype(out_ref.dtype)


def _loss_math_f32(src, tgt, w, out_dtype):
    """Same math as the kernel; used only for the tiny (<128 elem) tail."""
    loss = jnp.abs(jnp.exp(-src.astype(jnp.float32)) - tgt.astype(jnp.float32))
    if w is not None:
        loss = loss * w.astype(jnp.float32)
    return loss.astype(out_dtype)


def _pipeline_buffer_budget():
    """VMEM budget (bytes) for the pipeline's double buffers, per generation."""
    try:
        kind = jax.devices()[0].device_kind.lower()
    except Exception:
        kind = ""
    try:
        vmem_cap = int(pltpu.get_tpu_info().vmem_capacity_bytes)
    except Exception:
        vmem_cap = 128 << 20
    if ("v6" in kind) or ("v7" in kind):
        budget = 24 << 20      # stays under the 32 MiB scoped default (v6e/v7x)
    else:
        budget = 12 << 20      # stays under v5e's 16 MiB scoped default
    # Never let the buffers exceed ~3/8 of physical VMEM (v7x: 64 MiB -> 24 MiB).
    return min(budget, (vmem_cap * 3) // 8)


_LANE_CANDIDATES = (4096, 2048, 1024, 512, 256, 128)


def inverse_sigmoid_loss(source, target, weight=None, *, block_bytes=None):
    """Elementwise InverseSigmoidLoss (reduction='none'). Shapes must match."""
    assert source.shape == target.shape
    if weight is not None:
        assert weight.shape == source.shape

    orig_shape = source.shape
    dtype = source.dtype
    itemsize = jnp.dtype(dtype).itemsize
    total = source.size
    num_streams = 3 if weight is None else 4   # inputs + output

    flat_src = source.reshape(-1)
    flat_tgt = target.reshape(-1)
    flat_w = weight.reshape(-1) if weight is not None else None

    # Kernel covers the multiple-of-128 prefix; the <128-element tail is jnp.
    main_total = (total // 128) * 128
    tail = total - main_total

    if main_total == 0:
        out = _loss_math_f32(flat_src, flat_tgt, flat_w, dtype)
        return out.reshape(orig_shape)

    # Lane width: widest multiple of 128 dividing the prefix, preferring one
    # that keeps >= 16 sublane rows (full vregs + multiple grid programs).
    lane = next((w for w in _LANE_CANDIDATES
                 if main_total % w == 0 and main_total // w >= 16), None)
    if lane is None:
        lane = next(w for w in _LANE_CANDIDATES if main_total % w == 0)
    rows = main_total // lane

    # Generation-aware block sizing: num_streams x 2 buffers x block_bytes must
    # fit the scoped-VMEM budget. Caller-supplied sizes are clamped so a block
    # that is fine on v6e cannot blow v7x's smaller VMEM.
    max_block = max(64 * 1024, _pipeline_buffer_budget() // (num_streams * 2))
    block_bytes = max_block if block_bytes is None else min(block_bytes, max_block)

    target_rows = max(16, block_bytes // (lane * itemsize))
    target_rows = (target_rows // 16) * 16
    if rows <= target_rows:
        block_rows = rows                       # block == full dim -> always legal
        if rows >= 32:
            # Split into >= 2 programs so both v7x TensorCores stream HBM.
            block_rows = min(rows, ((pl.cdiv(rows, 2) + 15) // 16) * 16)
    else:
        block_rows = target_rows

    grid = (pl.cdiv(rows, block_rows),)         # ragged last block is masked
    spec = pl.BlockSpec((block_rows, lane), lambda i: (i, 0))

    def _prep(x):
        x = x if main_total == total else x[:main_total]
        return x.reshape(rows, lane)

    args = [_prep(flat_src), _prep(flat_tgt)]
    kernel = _inv_sigmoid_loss_kernel
    flops_per_elem = 2                           # sub + abs (exp is transcendental)
    if weight is not None:
        args.append(_prep(flat_w))
        kernel = _inv_sigmoid_loss_weighted_kernel
        flops_per_elem = 3

    n = rows * lane
    cost = pl.CostEstimate(flops=flops_per_elem * n,
                           transcendentals=n,
                           bytes_accessed=num_streams * n * itemsize)

    out2d = pl.pallas_call(
        kernel,
        out_shape=jax.ShapeDtypeStruct((rows, lane), dtype),
        grid=grid,
        in_specs=[spec] * len(args),
        out_specs=spec,
        compiler_params=pltpu.CompilerParams(
            dimension_semantics=("parallel",)),
        cost_estimate=cost,
    )(*args)

    if tail:
        tail_out = _loss_math_f32(
            flat_src[main_total:], flat_tgt[main_total:],
            None if flat_w is None else flat_w[main_total:], dtype)
        return jnp.concatenate([out2d.reshape(-1), tail_out]).reshape(orig_shape)
    return out2d.reshape(orig_shape)


def _reference(source, target, weight=None):
    inv = 1.0 / jax.nn.sigmoid(source) - 1.0
    loss = jnp.abs(inv - target)
    if weight is not None:
        loss = loss * weight
    return loss


if __name__ == "__main__":
    key = jax.random.PRNGKey(0)
    k1, k2, k3 = jax.random.split(key, 3)

    # NCHW inputs, small shapes.
    shape = (2, 4, 16, 16)
    source = jax.random.normal(k1, shape, dtype=jnp.float32)
    target = jax.random.normal(k2, shape, dtype=jnp.float32) * 0.5 + 1.0
    weight = jax.random.uniform(k3, shape, dtype=jnp.float32)

    # Unweighted path.
    out = jax.block_until_ready(inverse_sigmoid_loss(source, target))
    ref = _reference(source, target)
    assert out.shape == shape and out.dtype == jnp.float32
    assert jnp.allclose(out, ref, atol=1e-4, rtol=1e-5)

    # Weighted path.
    out_w = jax.block_until_ready(inverse_sigmoid_loss(source, target, weight))
    ref_w = _reference(source, target, weight)
    assert jnp.allclose(out_w, ref_w, atol=1e-4, rtol=1e-5)

    # Multi-step grid with a ragged (masked) last block.
    shape2 = (2, 4, 160, 160)  # 204800 elems -> lane 4096, 50 rows
    s2 = jax.random.normal(k1, shape2, dtype=jnp.float32)
    t2 = jax.random.normal(k2, shape2, dtype=jnp.float32)
    out2 = jax.block_until_ready(
        inverse_sigmoid_loss(s2, t2, block_bytes=64 * 1024))
    assert jnp.allclose(out2, _reference(s2, t2), atol=1e-4, rtol=1e-5)

    # Default (generation-aware) block sizing with >=2 grid programs.
    out2b = jax.block_until_ready(inverse_sigmoid_loss(s2, t2))
    assert jnp.allclose(out2b, _reference(s2, t2), atol=1e-4, rtol=1e-5)

    # Non-multiple-of-128 total: prefix kernel + jnp tail (no pad / no slice pass).
    shape3 = (3, 5, 7, 11)
    s3 = jax.random.normal(k1, shape3, dtype=jnp.float32)
    t3 = jax.random.normal(k2, shape3, dtype=jnp.float32)
    w3 = jax.random.uniform(k3, shape3, dtype=jnp.float32)
    out3 = jax.block_until_ready(inverse_sigmoid_loss(s3, t3))
    assert jnp.allclose(out3, _reference(s3, t3), atol=1e-4, rtol=1e-5)
    out3w = jax.block_until_ready(inverse_sigmoid_loss(s3, t3, w3))
    assert jnp.allclose(out3w, _reference(s3, t3, w3), atol=1e-4, rtol=1e-5)

    print("KERNEL_OK")
</pallas_src>

<mosaic_0001>
module attributes {stable_mosaic.version = 11 : i64} {
  func.func @_inv_sigmoid_loss_kernel(%arg0: i32, %arg1: memref<16x128xf32, #tpu.memory_space<vmem>>, %arg2: memref<16x128xf32, #tpu.memory_space<vmem>>, %arg3: memref<16x128xf32, #tpu.memory_space<vmem>>) attributes {dimension_semantics = [#tpu.dimension_semantics<parallel>], iteration_bounds = array<i64: 1>, scalar_prefetch = 0 : i64, scratch_operands = 0 : i64, tpu.core_type = #tpu.core_type<tc>, window_params = [{transform_indices = @transform_0, window_bounds = array<i64: 16, 128>}, {transform_indices = @transform_1, window_bounds = array<i64: 16, 128>}, {transform_indices = @transform_2, window_bounds = array<i64: 16, 128>}]} {
    %c0 = arith.constant 0 : index
    %c0_0 = arith.constant 0 : index
    %0 = vector.load %arg1[%c0, %c0_0] : memref<16x128xf32, #tpu.memory_space<vmem>>, vector<16x128xf32>
    %c0_1 = arith.constant 0 : index
    %c0_2 = arith.constant 0 : index
    %1 = vector.load %arg2[%c0_1, %c0_2] : memref<16x128xf32, #tpu.memory_space<vmem>>, vector<16x128xf32>
    %cst = arith.constant 0.000000e+00 : f32
    %2 = vector.broadcast %cst : f32 to vector<16x128xf32>
    %3 = arith.subf %2, %0 : vector<16x128xf32>
    %4 = math.exp %3 : vector<16x128xf32>
    %5 = arith.subf %4, %1 : vector<16x128xf32>
    %6 = math.absf %5 : vector<16x128xf32>
    %c0_3 = arith.constant 0 : index
    %c0_4 = arith.constant 0 : index
    %7 = vector.load %arg3[%c0_3, %c0_4] : memref<16x128xf32, #tpu.memory_space<vmem>>, vector<16x128xf32>
    tpu.vector_store %arg3[%c0_3, %c0_4], %6 {strides = array<i32>} : memref<16x128xf32, #tpu.memory_space<vmem>>, vector<16x128xf32>,
    return
  }
  func.func @transform_0(%arg0: i32) -> (i32, i32) {
    %c0_i32 = arith.constant 0 : i32
    %c0_i32_0 = arith.constant 0 : i32
    return %arg0, %c0_i32 : i32, i32
  }
  func.func @transform_1(%arg0: i32) -> (i32, i32) {
    %c0_i32 = arith.constant 0 : i32
    %c0_i32_0 = arith.constant 0 : i32
    return %arg0, %c0_i32 : i32, i32
  }
  func.func @transform_2(%arg0: i32) -> (i32, i32) {
    %c0_i32 = arith.constant 0 : i32
    %c0_i32_0 = arith.constant 0 : i32
    return %arg0, %c0_i32 : i32, i32
  }
}

</mosaic_0001>

<llo_original>
// kernel: tpu_custom_call.1
$region0: #{tpu_custom_call.1}
  #allocation0 [shape = 'u32[]', space=smem, size = 0x4, offset = 0x4, fixed_abs, tag = 'smem constant byte address 0x4 - core index']
  #allocation1 [shape = 'u32[72,128]{1,0:T(1,128)}', space=vmem, size = 0x9000, scoped, tag = 'internal scratch']
  %s0 = inlined_call_operand.hbm [shape: f32[16,128], index: 0, kind: input, shape index: {}]
  %s1 = inlined_call_operand.hbm [shape: f32[16,128], index: 1, kind: input, shape index: {}]
  %s2 = inlined_call_operand.hbm [shape: f32[16,128], index: 2, kind: output, shape index: {}]
  %s3 = sld [smem:[#allocation0]]
  $region26: #{tpu_custom_call.1} parent=0
    _
  %s5 = ssub.s32 1, %s3
  %s6 = scalar_select 0, %s5, %s3
  $region1: #{tpu_custom_call.1} parent=0
    #allocation2 [shape = 'u8[8192]{0}', space=vmem, size = 0x2000, scoped, tag = 'input window, operand 0, single buffered']
    #allocation3 [shape = 's32[1]{0}', space=sflag, size = 0x4, scoped, tag = 'scoped memory for tpu_custom_call.1']
    #allocation4 [shape = 's32[1]{0}', space=sflag, size = 0x4, scoped, tag = 'scoped memory for tpu_custom_call.1']
    #allocation5 [shape = 'u8[8192]{0}', space=vmem, size = 0x2000, scoped, tag = 'input window, operand 1, single buffered']
    #allocation6 [shape = 's32[1]{0}', space=sflag, size = 0x4, scoped, tag = 'scoped memory for tpu_custom_call.1']
    #allocation7 [shape = 'u8[8192]{0}', space=vmem, size = 0x2000, scoped, tag = 'output window, operand 0, single buffered']
    %7 = vsyncpa [#allocation3], 0
    %8 = vsyncpa [#allocation6], 0
    %9 = vsyncpa [#allocation4], 0
    // Predicated region
    $region2: #{tpu_custom_call.1} parent=1 // pred_check
      _
    $region3: #{tpu_custom_call.1} parent=1 // pred_check_branch
      %11 = sbr.rel (0) target = $region5
    $region4: #{tpu_custom_call.1} parent=1 // pred_region
      %13 = vsyncadd [#allocation3], 0
      %s14 = sshll.u32 %s0, 4
      %s15 = int_to_ptr.hbm [resolvable:$true] %s14
      %s16 = sshll.u32 [#allocation2], 4
      %s17 = int_to_ptr.vmem [resolvable:$true] %s16
      %22 = dma.hbm_to_vmem [thread:$0]  %s15, 256, %s17, [#allocation3], 128, 128, 8
    $region5: #{tpu_custom_call.1} parent=1 // pred_fallthru
      _
    // Predicated region
    $region6: #{tpu_custom_call.1} parent=1 // pred_check
      _
    $region7: #{tpu_custom_call.1} parent=1 // pred_check_branch
      %24 = sbr.rel (0) target = $region9
    $region8: #{tpu_custom_call.1} parent=1 // pred_region
      %26 = vsyncadd [#allocation6], 0
      %s27 = sshll.u32 %s1, 4
      %s28 = int_to_ptr.hbm [resolvable:$true] %s27
      %s29 = sshll.u32 [#allocation5], 4
      %s30 = int_to_ptr.vmem [resolvable:$true] %s29
      %35 = dma.hbm_to_vmem [thread:$0]  %s28, 256, %s30, [#allocation6], 128, 128, 8
    $region9: #{tpu_custom_call.1} parent=1 // pred_fallthru
      _
    // Predicated region
    $region10: #{tpu_custom_call.1} parent=1 // pred_check
      _
    $region11: #{tpu_custom_call.1} parent=1 // pred_check_branch
      %37 = sbr.rel (0) target = $region13
    $region12: #{tpu_custom_call.1} parent=1 // pred_region
      %39 = dma.done [#allocation3], 256
    $region13: #{tpu_custom_call.1} parent=1 // pred_fallthru
      _
    // Predicated region
    $region14: #{tpu_custom_call.1} parent=1 // pred_check
      _
    $region15: #{tpu_custom_call.1} parent=1 // pred_check_branch
      %41 = sbr.rel (0) target = $region17
    $region16: #{tpu_custom_call.1} parent=1 // pred_region
      %43 = dma.done [#allocation6], 256
    $region17: #{tpu_custom_call.1} parent=1 // pred_fallthru
      _
    %v44 = vld [vmem:[#allocation2] sm:$0xff]
    %v45 = vld [vmem:[#allocation2 + $0x8] sm:$0xff]
    %v46 = vld [vmem:[#allocation5] sm:$0xff]
    %v47 = vld [vmem:[#allocation5 + $0x8] sm:$0xff]
    %v48 = vsub.f32 0.0, %v44
    %v49 = vsub.f32 0.0, %v45
    %v50 = vmul.f32 %v48, 1.442695
    %v51 = vpow.pop %v50
    %v52 = vmul.f32 %v49, 1.442695
    %v53 = vpow.pop %v52
    %v54 = vsub.f32 %v51, %v46
    %v55 = vsub.f32 %v53, %v47
    %v56 = vand.u32 2147483647, %v54
    %v57 = vand.u32 2147483647, %v55
    %58 = vst [vmem:[#allocation7] sm:$0xff] %v56
    %59 = vst [vmem:[#allocation7 + $0x8] sm:$0xff] %v57
    // Predicated region
    $region18: #{tpu_custom_call.1} parent=1 // pred_check
      _
    $region19: #{tpu_custom_call.1} parent=1 // pred_check_branch
      %61 = sbr.rel (0) target = $region21
    $region20: #{tpu_custom_call.1} parent=1 // pred_region
      %63 = vsyncadd [#allocation4], 0
      %s64 = sshll.u32 [#allocation7], 4
      %s65 = int_to_ptr.vmem [resolvable:$true] %s64
      %s66 = sshll.u32 %s2, 4
      %s67 = int_to_ptr.hbm [resolvable:$true] %s66
      %72 = dma.vmem_to_hbm [thread:$0]  %s65, 256, %s67, [#allocation4], 128, 128, 8
    $region21: #{tpu_custom_call.1} parent=1 // pred_fallthru
      _
    // Predicated region
    $region22: #{tpu_custom_call.1} parent=1 // pred_check
      _
    $region23: #{tpu_custom_call.1} parent=1 // pred_check_branch
      %74 = sbr.rel (0) target = $region25
    $region24: #{tpu_custom_call.1} parent=1 // pred_region
      %76 = dma.done [#allocation4], 256
    $region25: #{tpu_custom_call.1} parent=1 // pred_fallthru
      _
    %77 = vsyncpa [#allocation3], 1
    %78 = vsyncpa [#allocation6], 1
    %79 = vsyncpa [#allocation4], 1

</llo_original>
